<compile_context>
chip_gen: v5e
topology: v5e:2x2
jax: 0.10.0
libtpu: 0.0.40
codegen_flags: <defaults>
</compile_context>

<pallas_src>
import jax
import jax.numpy as jnp
from jax.experimental import pallas as pl
from jax.experimental.pallas import tpu as pltpu

EPS = 1e-5


def _pick_tile(total, cap, quantum=128):
    """Largest tile <= cap dividing `total`, preferring multiples of `quantum`.
    Falls back to the full extent (block == full array dim is always legal)."""
    if total <= cap:
        return total
    t = (cap // quantum) * quantum
    while t >= quantum:
        if total % t == 0:
            return t
        t -= quantum
    # TODO(synk): pad M to a lane-friendly multiple (with masked stats) instead of
    # falling back to the full extent for ragged point counts.
    return total


def bn_stats(ssum, ssq, m):
    """Per-channel (mu, 1/sqrt(var+eps)) from streamed sum / sum-of-squares (biased var)."""
    mu = ssum / m
    var = jnp.maximum(ssq / m - mu * mu, 0.0)
    return mu, jax.lax.rsqrt(var + EPS)


def conv_stream(w, x, *, pre=None, gbias=None, batch_ids=None, tile_m_cap=2048):
    """Single-pass streamed 1x1 conv:  y = W @ prenorm(x)  (+ per-batch gbias column).

    - W (cout, cin) bf16 is fully VMEM-resident; X (cin, M) bf16 is streamed once in
      lane-dense M tiles.
    - `pre = (mu, istd, relu)` applies the *producer's* BatchNorm (+ReLU) to each loaded
      X tile (consumer-side BN fold).
    - Per-channel sum / sum-of-squares of the raw f32 y are emitted as tiny side outputs
      (resident accumulator blocks) so the next layer can fold this layer's BN.

    Returns (y_unnormalized (cout, M) bf16, sum (cout, 1) f32, sumsq (cout, 1) f32).
    """
    cout, cin = w.shape
    cin_x, m = x.shape
    assert cin_x == cin
    has_pre = pre is not None
    pre_relu = True
    mu_in = istd_in = None
    if has_pre:
        mu_in, istd_in, pre_relu = pre
    if cin < 8:                      # pad the tiny xyz contraction dim up to 8 sublanes
        pad = 8 - cin
        w = jnp.pad(w, ((0, 0), (0, pad)))
        x = jnp.pad(x, ((0, pad), (0, 0)))
        if has_pre:
            mu_in = jnp.pad(mu_in, ((0, pad), (0, 0)))
            istd_in = jnp.pad(istd_in, ((0, pad), (0, 0)))
        cin = 8

    tile_m = _pick_tile(m, tile_m_cap)
    n_mt = m // tile_m
    has_g = gbias is not None
    if has_g:
        assert batch_ids is not None and batch_ids.shape == (1, m)
        nb = ((gbias.shape[1] + 7) // 8) * 8          # pad batch cols for MXU layout
        gbias = jnp.pad(gbias.astype(jnp.float32),
                        ((0, 0), (0, nb - gbias.shape[1])))

    def kernel(*refs):
        y_ref, s_ref, q_ref = refs[-3], refs[-2], refs[-1]
        w_ref, x_ref = refs[0], refs[1]
        pos = 2
        if has_pre:
            mu_ref, istd_ref = refs[pos], refs[pos + 1]
            pos += 2
        if has_g:
            gb_ref, bid_ref = refs[pos], refs[pos + 1]

        mt = pl.program_id(0)
        if has_pre:
            z = (x_ref[...].astype(jnp.float32) - mu_ref[...]) * istd_ref[...]
            if pre_relu:
                z = jnp.maximum(z, 0.0)
            zb = z.astype(jnp.bfloat16)
        else:
            zb = x_ref[...]
        y = jnp.dot(w_ref[...], zb, preferred_element_type=jnp.float32)
        if has_g:
            # per-(channel, batch) bias: select the batch column with a one-hot matmul
            one_hot = (bid_ref[...] ==
                       jax.lax.broadcasted_iota(jnp.int32, (nb, tile_m), 0)
                       ).astype(jnp.float32)
            y = y + jnp.dot(gb_ref[...], one_hot, preferred_element_type=jnp.float32)

        @pl.when(mt == 0)
        def _():
            s_ref[...] = jnp.zeros_like(s_ref)
            q_ref[...] = jnp.zeros_like(q_ref)

        s_ref[...] += jnp.sum(y, axis=1, keepdims=True)
        q_ref[...] += jnp.sum(y * y, axis=1, keepdims=True)
        y_ref[...] = y.astype(y_ref.dtype)

    in_specs = [pl.BlockSpec((cout, cin), lambda mt: (0, 0)),      # W fully resident
                pl.BlockSpec((cin, tile_m), lambda mt: (0, mt))]   # X streamed once
    args = [w.astype(jnp.bfloat16), x.astype(jnp.bfloat16)]
    if has_pre:
        in_specs += [pl.BlockSpec((cin, 1), lambda mt: (0, 0)),
                     pl.BlockSpec((cin, 1), lambda mt: (0, 0))]
        args += [mu_in.astype(jnp.float32), istd_in.astype(jnp.float32)]
    if has_g:
        in_specs += [pl.BlockSpec((cout, nb), lambda mt: (0, 0)),
                     pl.BlockSpec((1, tile_m), lambda mt: (0, mt))]
        args += [gbias, batch_ids]

    out_shape = (jax.ShapeDtypeStruct((cout, m), jnp.bfloat16),
                 jax.ShapeDtypeStruct((cout, 1), jnp.float32),
                 jax.ShapeDtypeStruct((cout, 1), jnp.float32))
    out_specs = (pl.BlockSpec((cout, tile_m), lambda mt: (0, mt)),
                 pl.BlockSpec((cout, 1), lambda mt: (0, 0)),       # resident accumulators
                 pl.BlockSpec((cout, 1), lambda mt: (0, 0)))
    return pl.pallas_call(
        kernel, out_shape=out_shape, grid=(n_mt,),
        in_specs=in_specs, out_specs=out_specs,
        compiler_params=pltpu.CompilerParams(dimension_semantics=("arbitrary",)),
    )(*args)


def conv_max(w, x, B, N, *, pre=None, tile_m_cap=2048):
    """Streamed 1x1 conv fused with the per-batch max-over-points reduction.

    The (cout, M) activation never touches HBM: each whole-batch tile is reduced in-kernel
    to its per-batch max.  BN is a positive-scale per-channel affine, so
    max(bn(y)) == bn(max(y)); the raw per-batch max plus the per-channel (sum, sumsq) are
    returned and the tiny (cout, B) result is normalized by the caller.
    """
    cout, cin = w.shape
    cin_x, m = x.shape
    assert cin_x == cin and m == B * N
    has_pre = pre is not None
    pre_relu = True
    mu_in = istd_in = None
    if has_pre:
        mu_in, istd_in, pre_relu = pre

    # whole batches per tile so a per-batch max never straddles a tile
    bpt = 1
    if N <= tile_m_cap:
        for d in range(1, B + 1):
            if B % d == 0 and d * N <= tile_m_cap:
                bpt = d
    # TODO(synk): when N > tile_m_cap, tile inside a batch with a running-max column.
    tile_m = bpt * N
    n_mt = m // tile_m

    def kernel(*refs):
        mx_ref, s_ref, q_ref = refs[-3], refs[-2], refs[-1]
        w_ref, x_ref = refs[0], refs[1]
        if has_pre:
            mu_ref, istd_ref = refs[2], refs[3]

        mt = pl.program_id(0)
        if has_pre:
            z = (x_ref[...].astype(jnp.float32) - mu_ref[...]) * istd_ref[...]
            if pre_relu:
                z = jnp.maximum(z, 0.0)
            zb = z.astype(jnp.bfloat16)
        else:
            zb = x_ref[...]
        y = jnp.dot(w_ref[...], zb, preferred_element_type=jnp.float32)

        @pl.when(mt == 0)
        def _():
            s_ref[...] = jnp.zeros_like(s_ref)
            q_ref[...] = jnp.zeros_like(q_ref)

        s_ref[...] += jnp.sum(y, axis=1, keepdims=True)
        q_ref[...] += jnp.sum(y * y, axis=1, keepdims=True)

        lane = jax.lax.broadcasted_iota(jnp.int32, (1, tile_m), 1)
        for j in range(bpt):            # static unroll: one max column per batch in tile
            in_b = jnp.logical_and(lane >= j * N, lane < (j + 1) * N)
            mx_ref[:, j:j + 1] = jnp.max(jnp.where(in_b, y, -jnp.inf),
                                         axis=1, keepdims=True)

    in_specs = [pl.BlockSpec((cout, cin), lambda mt: (0, 0)),
                pl.BlockSpec((cin, tile_m), lambda mt: (0, mt))]
    args = [w.astype(jnp.bfloat16), x.astype(jnp.bfloat16)]
    if has_pre:
        in_specs += [pl.BlockSpec((cin, 1), lambda mt: (0, 0)),
                     pl.BlockSpec((cin, 1), lambda mt: (0, 0))]
        args += [mu_in.astype(jnp.float32), istd_in.astype(jnp.float32)]

    out_shape = (jax.ShapeDtypeStruct((cout, B), jnp.float32),
                 jax.ShapeDtypeStruct((cout, 1), jnp.float32),
                 jax.ShapeDtypeStruct((cout, 1), jnp.float32))
    out_specs = (pl.BlockSpec((cout, bpt), lambda mt: (0, mt)),
                 pl.BlockSpec((cout, 1), lambda mt: (0, 0)),
                 pl.BlockSpec((cout, 1), lambda mt: (0, 0)))
    return pl.pallas_call(
        kernel, out_shape=out_shape, grid=(n_mt,),
        in_specs=in_specs, out_specs=out_specs,
        compiler_params=pltpu.CompilerParams(dimension_semantics=("arbitrary",)),
    )(*args)


def conv_bn_head(w3, w4, b4, x, *, pre, tile_m_cap=2048):
    """seg conv3 + bn3 + ReLU + seg conv4 (+bias) + per-point log-softmax, fused.

    Two-pass grid (stats, then normalize + head): conv3's (128, M) activation never hits
    HBM; the only streamed output is the (k, M) log-probabilities.
    """
    cout3, cin = w3.shape
    k = w4.shape[0]
    cin_x, m = x.shape
    assert cin_x == cin and w4.shape[1] == cout3
    mu_in, istd_in, pre_relu = pre
    tile_m = _pick_tile(m, tile_m_cap)
    n_mt = m // tile_m
    inv_m = 1.0 / float(m)
    b4r = b4.reshape(k, 1).astype(jnp.float32)

    def kernel(w3_ref, w4_ref, b4_ref, x_ref, mu_ref, istd_ref,
               o_ref, s_ref, q_ref):
        p = pl.program_id(0)
        mt = pl.program_id(1)
        z = (x_ref[...].astype(jnp.float32) - mu_ref[...]) * istd_ref[...]
        if pre_relu:
            z = jnp.maximum(z, 0.0)
        y = jnp.dot(w3_ref[...], z.astype(jnp.bfloat16),
                    preferred_element_type=jnp.float32)

        @pl.when(jnp.logical_and(p == 0, mt == 0))
        def _():
            s_ref[...] = jnp.zeros_like(s_ref)
            q_ref[...] = jnp.zeros_like(q_ref)

        @pl.when(p == 0)                    # pass 0: bn3 batch statistics
        def _():
            s_ref[...] += jnp.sum(y, axis=1, keepdims=True)
            q_ref[...] += jnp.sum(y * y, axis=1, keepdims=True)

        @pl.when(p == 1)                    # pass 1: bn3 + relu + conv4 + log-softmax
        def _():
            mu = s_ref[...] * inv_m
            var = jnp.maximum(q_ref[...] * inv_m - mu * mu, 0.0)
            h = jnp.maximum((y - mu) * jax.lax.rsqrt(var + EPS), 0.0)
            logits = jnp.dot(w4_ref[...], h.astype(jnp.bfloat16),
                             preferred_element_type=jnp.float32) + b4_ref[...]
            zz = logits - jnp.max(logits, axis=0, keepdims=True)
            o_ref[...] = zz - jnp.log(jnp.sum(jnp.exp(zz), axis=0, keepdims=True))

    return pl.pallas_call(
        kernel,
        out_shape=jax.ShapeDtypeStruct((k, m), jnp.float32),
        grid=(2, n_mt),
        in_specs=[pl.BlockSpec((cout3, cin), lambda p, mt: (0, 0)),
                  pl.BlockSpec((k, cout3), lambda p, mt: (0, 0)),
                  pl.BlockSpec((k, 1), lambda p, mt: (0, 0)),
                  pl.BlockSpec((cin, tile_m), lambda p, mt: (0, mt)),
                  pl.BlockSpec((cin, 1), lambda p, mt: (0, 0)),
                  pl.BlockSpec((cin, 1), lambda p, mt: (0, 0))],
        # Pass 0 parks the (unwritten) output window on block (0, 0); pass 1 streams every
        # block exactly once with final data.  Even if a future Pallas revision flushes the
        # parked block early, pass 1 rewrites it, so the result stays correct.
        out_specs=pl.BlockSpec((k, tile_m), lambda p, mt: (0, p * mt)),
        scratch_shapes=[pltpu.VMEM((cout3, 1), jnp.float32),
                        pltpu.VMEM((cout3, 1), jnp.float32)],
        compiler_params=pltpu.CompilerParams(
            dimension_semantics=("arbitrary", "arbitrary")),
    )(w3.astype(jnp.bfloat16), w4.astype(jnp.bfloat16), b4r,
      x.astype(jnp.bfloat16), mu_in.astype(jnp.float32),
      istd_in.astype(jnp.float32))


def stn_fc_head(g, w1, w2, w3, b3):
    """Fused STN fc1->bn->relu->fc2->bn->relu->fc3(+bias) in ONE Pallas call (bf16 MXU).

    g: (1024, B) f32.  Internal layout is (B, C) so the wide channel dim sits on the lane
    axis; BN statistics are over the batch axis (BatchNorm1d on 2-D input).  fc1/fc2
    biases cancel exactly under batch-stat BN and are omitted.  -> (B, 9) f32.
    """
    B = g.shape[1]
    gT = g.T.astype(jnp.bfloat16)                    # (B, 1024)
    w1t = w1.T.astype(jnp.bfloat16)                  # (1024, 512)
    w2t = w2.T.astype(jnp.bfloat16)                  # (512, 256)
    w3t = w3.T.astype(jnp.bfloat16)                  # (256, 9)
    b3r = b3.reshape(1, -1).astype(jnp.float32)      # (1, 9)

    def kernel(g_ref, w1_ref, w2_ref, w3_ref, b3_ref, o_ref):
        def bn_relu(h):
            mu = jnp.mean(h, axis=0, keepdims=True)
            var = jnp.maximum(jnp.mean(h * h, axis=0, keepdims=True) - mu * mu, 0.0)
            return jnp.maximum((h - mu) * jax.lax.rsqrt(var + EPS), 0.0)

        h = bn_relu(jnp.dot(g_ref[...], w1_ref[...],
                            preferred_element_type=jnp.float32))
        h = bn_relu(jnp.dot(h.astype(jnp.bfloat16), w2_ref[...],
                            preferred_element_type=jnp.float32))
        o_ref[...] = (jnp.dot(h.astype(jnp.bfloat16), w3_ref[...],
                              preferred_element_type=jnp.float32) + b3_ref[...])

    return pl.pallas_call(
        kernel,
        out_shape=jax.ShapeDtypeStruct((B, w3.shape[0]), jnp.float32),
        grid=(1,),
        in_specs=[pl.BlockSpec(gT.shape, lambda i: (0, 0)),
                  pl.BlockSpec(w1t.shape, lambda i: (0, 0)),
                  pl.BlockSpec(w2t.shape, lambda i: (0, 0)),
                  pl.BlockSpec(w3t.shape, lambda i: (0, 0)),
                  pl.BlockSpec(b3r.shape, lambda i: (0, 0))],
        out_specs=pl.BlockSpec((B, w3.shape[0]), lambda i: (0, 0)),
    )(gT, w1t, w2t, w3t, b3r)


def to_cm(x):
    """(B, C, N) -> (C, B*N) with columns ordered batch-major (m = b*N + n)."""
    b, c, n = x.shape
    return jnp.transpose(x, (1, 0, 2)).reshape(c, b * n)


def init_params(key, k=2):
    def lin(kk, cout, cin):
        kw, kb = jax.random.split(kk)
        w = jax.random.normal(kw, (cout, cin), jnp.float32) * (0.5 / jnp.sqrt(cin))
        b = jax.random.normal(kb, (cout,), jnp.float32) * 0.02
        return w, b

    keys = jax.random.split(key, 13)
    p = {}
    # STN3d (input transform net)
    p['stn_c1'] = lin(keys[0], 64, 3)
    p['stn_c2'] = lin(keys[1], 128, 64)
    p['stn_c3'] = lin(keys[2], 1024, 128)
    p['stn_f1'] = lin(keys[3], 512, 1024)
    p['stn_f2'] = lin(keys[4], 256, 512)
    p['stn_f3'] = lin(keys[5], 9, 256)
    # PointNetFeat shared MLP
    p['feat_c1'] = lin(keys[6], 64, 3)
    p['feat_c2'] = lin(keys[7], 128, 64)
    p['feat_c3'] = lin(keys[8], 1024, 128)
    # segmentation head
    p['seg_c1'] = lin(keys[9], 512, 1088)
    p['seg_c2'] = lin(keys[10], 256, 512)
    p['seg_c3'] = lin(keys[11], 128, 256)
    p['seg_c4'] = lin(keys[12], k, 128)
    return p


def seg_model_forward(params, x, k=2):
    B, _, N = x.shape
    M = B * N
    iden = jnp.array([1, 0, 0, 0, 1, 0, 0, 0, 1], jnp.float32)

    # ---------------- STN3d (input transform net) ----------------
    xm = to_cm(x)                                                     # (3, M)
    y1, s1, q1 = conv_stream(params['stn_c1'][0], xm)                 # (64, M) raw y
    pre1 = (*bn_stats(s1, q1, M), True)
    y2, s2, q2 = conv_stream(params['stn_c2'][0], y1, pre=pre1)       # (128, M)
    pre2 = (*bn_stats(s2, q2, M), True)
    mx3, s3, q3 = conv_max(params['stn_c3'][0], y2, B, N, pre=pre2)   # (1024, B) raw max
    mu3, istd3 = bn_stats(s3, q3, M)
    g = jnp.maximum((mx3 - mu3) * istd3, 0.0)                         # relu(bn3(max))
    f = stn_fc_head(g, params['stn_f1'][0], params['stn_f2'][0],
                    params['stn_f3'][0], params['stn_f3'][1])         # (B, 9)
    trans = (f + iden[None, :]).reshape(B, 3, 3)

    # apply the learned 3x3 transform (tiny batched matmul -- plain-JAX glue)
    xt = jnp.einsum('bcn,bck->bkn', x, trans)                         # (B, 3, N)

    # ------------- PointNetFeat (global_feat=False) -------------
    xtm = to_cm(xt)
    ypf, spf, qpf = conv_stream(params['feat_c1'][0], xtm)            # pointfeat (raw)
    prepf = (*bn_stats(spf, qpf, M), True)
    yf2, sf2, qf2 = conv_stream(params['feat_c2'][0], ypf, pre=prepf)
    pref2 = (*bn_stats(sf2, qf2, M), True)
    mxf, sf3, qf3 = conv_max(params['feat_c3'][0], yf2, B, N, pre=pref2)
    muf3, istdf3 = bn_stats(sf3, qf3, M)
    g = (mxf - muf3) * istdf3                                         # bn3, no relu (1024, B)

    # ---------------- segmentation head ----------------
    # conv1 (1088 -> 512) split: per-point part uses only the 64 pointfeat channels;
    # the 1024 global channels collapse to gbias = W_g @ g added in-kernel per batch.
    w1 = params['seg_c1'][0]
    w_g, w_p = w1[:, :1024], w1[:, 1024:]                             # concat order: [global, point]
    gbias = jnp.dot(w_g.astype(jnp.bfloat16), g.astype(jnp.bfloat16),
                    preferred_element_type=jnp.float32)               # (512, B), tiny
    batch_ids = (jnp.arange(M, dtype=jnp.int32) // N).reshape(1, M)

    ys1, ss1, qs1 = conv_stream(w_p, ypf, pre=prepf,
                                gbias=gbias, batch_ids=batch_ids)     # (512, M)
    pres1 = (*bn_stats(ss1, qs1, M), True)
    ys2, ss2, qs2 = conv_stream(params['seg_c2'][0], ys1, pre=pres1)  # (256, M)
    pres2 = (*bn_stats(ss2, qs2, M), True)
    logp = conv_bn_head(params['seg_c3'][0], params['seg_c4'][0],
                        params['seg_c4'][1], ys2, pre=pres2)          # (k, M) f32

    out = jnp.transpose(logp.reshape(k, B, N), (1, 2, 0))             # (B, N, k)
    return out, trans, None     # trans_feat is None (feature_transform=False)


def reference_forward(params, x, k=2):
    """Plain-JAX reference mirroring the kernels' precision choices.

    BN = training-mode batch statistics (biased variance, single-pass E[y^2]-mu^2 form,
    eps=1e-5).  Matmul inputs are bf16 with f32 accumulation; un-normalized conv
    activations are rounded to bf16 between layers (they live in HBM as bf16 in the
    kernel pipeline).  Conv / fc biases that are immediately followed by BN are dropped
    -- under batch-statistics BN they cancel exactly, so the module's forward semantics
    are unchanged.  A large mismatch therefore indicates an implementation bug rather
    than a precision difference.
    """
    B, _, N = x.shape
    M = B * N
    f32, bf16 = jnp.float32, jnp.bfloat16

    def dotb(w, h):
        return jnp.dot(w.astype(bf16), h.astype(bf16), preferred_element_type=f32)

    def stats(y):
        mu = y.mean(axis=1, keepdims=True)
        var = jnp.maximum((y * y).mean(axis=1, keepdims=True) - mu * mu, 0.0)
        return mu, jax.lax.rsqrt(var + EPS)

    def bn_q(y, relu=True):
        mu, istd = stats(y)
        z = (y.astype(bf16).astype(f32) - mu) * istd   # y is stored in HBM as bf16
        return jnp.maximum(z, 0.0) if relu else z

    def max_bn(y, relu):
        mu, istd = stats(y)                            # stats over all B*N points
        gmax = jnp.max(y.reshape(-1, B, N), axis=2)
        z = (gmax - mu) * istd
        return jnp.maximum(z, 0.0) if relu else z

    xm = to_cm(x)
    # ----- STN3d -----
    h = bn_q(dotb(params['stn_c1'][0], xm))
    h = bn_q(dotb(params['stn_c2'][0], h))
    g = max_bn(dotb(params['stn_c3'][0], h), relu=True)              # (1024, B)

    def fc_bn_relu(w, h):
        y = dotb(w, h)
        mu = y.mean(axis=1, keepdims=True)
        var = jnp.maximum((y * y).mean(axis=1, keepdims=True) - mu * mu, 0.0)
        return jnp.maximum((y - mu) * jax.lax.rsqrt(var + EPS), 0.0)

    f = fc_bn_relu(params['stn_f1'][0], g)
    f = fc_bn_relu(params['stn_f2'][0], f)
    f = dotb(params['stn_f3'][0], f) + params['stn_f3'][1][:, None]  # (9, B)
    iden = jnp.array([1, 0, 0, 0, 1, 0, 0, 0, 1], f32)
    trans = (f.T + iden[None, :]).reshape(B, 3, 3)

    xt = jnp.einsum('bcn,bck->bkn', x, trans)
    xtm = to_cm(xt)

    # ----- PointNetFeat (global_feat=False) -----
    pf = bn_q(dotb(params['feat_c1'][0], xtm))                        # pointfeat (64, M)
    h = bn_q(dotb(params['feat_c2'][0], pf))
    g = max_bn(dotb(params['feat_c3'][0], h), relu=False)             # (1024, B)

    # ----- segmentation head -----
    g_rep = jnp.repeat(g[:, :, None], N, axis=2).reshape(1024, M)
    feat = jnp.concatenate([g_rep, pf], axis=0)                       # [global, point] (1088, M)
    h = bn_q(dotb(params['seg_c1'][0], feat))
    h = bn_q(dotb(params['seg_c2'][0], h))
    y3 = dotb(params['seg_c3'][0], h)
    mu3, istd3 = stats(y3)
    h = jnp.maximum((y3 - mu3) * istd3, 0.0)                          # head keeps y3 in f32
    logits = dotb(params['seg_c4'][0], h) + params['seg_c4'][1][:, None]
    logp = jax.nn.log_softmax(logits, axis=0)
    out = jnp.transpose(logp.reshape(k, B, N), (1, 2, 0))
    return out, trans


if __name__ == "__main__":
    key = jax.random.PRNGKey(0)
    pkey, xkey = jax.random.split(key)
    K = 2
    B, N = 4, 64
    params = init_params(pkey, k=K)
    x = jax.random.normal(xkey, (B, 3, N), jnp.float32)   # PyTorch input: (B, 3, n_pts)

    out, trans, trans_feat = seg_model_forward(params, x, k=K)
    jax.block_until_ready((out, trans))

    assert out.shape == (B, N, K)
    assert trans.shape == (B, 3, 3)
    assert trans_feat is None
    probs = jnp.exp(out)
    # log_softmax sanity: per-point probabilities sum to ~1
    assert bool(jnp.all(jnp.abs(jnp.sum(probs, axis=-1) - 1.0) < 1e-3))

    # cross-check against a plain-JAX reference with matching precision choices
    out_ref, trans_ref = reference_forward(params, x, k=K)
    assert bool(jnp.max(jnp.abs(jnp.exp(out_ref) - probs)) < 0.05)
    assert bool(jnp.max(jnp.abs(trans_ref - trans)) < 0.05)

    print("KERNEL_OK")
</pallas_src>

<mosaic_0001>
module attributes {stable_mosaic.version = 11 : i64} {
  func.func @kernel(%arg0: i32, %arg1: memref<64x8xbf16, #tpu.memory_space<vmem>>, %arg2: memref<8x256xbf16, #tpu.memory_space<vmem>>, %arg3: memref<64x256xbf16, #tpu.memory_space<vmem>>, %arg4: memref<64x1xf32, #tpu.memory_space<vmem>>, %arg5: memref<64x1xf32, #tpu.memory_space<vmem>>) attributes {dimension_semantics = [#tpu.dimension_semantics<arbitrary>], iteration_bounds = array<i64: 1>, scalar_prefetch = 0 : i64, scratch_operands = 0 : i64, tpu.core_type = #tpu.core_type<tc>, window_params = [{pipeline_mode = #tpu.pipeline_mode<synchronous>, transform_indices = @transform_0, window_bounds = array<i64: 64, 8>}, {transform_indices = @transform_1, window_bounds = array<i64: 8, 256>}, {transform_indices = @transform_2, window_bounds = array<i64: 64, 256>}, {pipeline_mode = #tpu.pipeline_mode<synchronous>, transform_indices = @transform_3, window_bounds = array<i64: 64, 1>}, {pipeline_mode = #tpu.pipeline_mode<synchronous>, transform_indices = @transform_4, window_bounds = array<i64: 64, 1>}]} {
    %c0 = arith.constant 0 : index
    %c0_0 = arith.constant 0 : index
    %0 = vector.load %arg2[%c0, %c0_0] : memref<8x256xbf16, #tpu.memory_space<vmem>>, vector<8x256xbf16>
    %c0_1 = arith.constant 0 : index
    %c0_2 = arith.constant 0 : index
    %1 = vector.load %arg1[%c0_1, %c0_2] : memref<64x8xbf16, #tpu.memory_space<vmem>>, vector<64x8xbf16>
    %cst = arith.constant dense<0.000000e+00> : vector<64x256xf32>
    %2 = tpu.matmul %1, %0, %cst {dimension_numbers = #tpu.dot_dimension_numbers<[1], [0], [0], [1], [0, 0, 1, 1], [], []>} : vector<64x8xbf16>, vector<8x256xbf16>, vector<64x256xf32> -> vector<64x256xf32>
    %c0_i32 = arith.constant 0 : i32
    %3 = arith.cmpi eq, %arg0, %c0_i32 : i32
    %4 = arith.extui %3 : i1 to i32
    %c0_i32_3 = arith.constant 0 : i32
    %5 = arith.cmpi ne, %4, %c0_i32_3 : i32
    scf.if %5 {
      %cst_16 = arith.constant 0.000000e+00 : f32
      %19 = vector.broadcast %cst_16 : f32 to vector<64x1xf32>
      %c0_17 = arith.constant 0 : index
      %c0_18 = arith.constant 0 : index
      %20 = vector.load %arg4[%c0_17, %c0_18] : memref<64x1xf32, #tpu.memory_space<vmem>>, vector<64x1xf32>
      tpu.vector_store %arg4[%c0_17, %c0_18], %19 {strides = array<i32>} : memref<64x1xf32, #tpu.memory_space<vmem>>, vector<64x1xf32>,
      %cst_19 = arith.constant 0.000000e+00 : f32
      %21 = vector.broadcast %cst_19 : f32 to vector<64x1xf32>
      %c0_20 = arith.constant 0 : index
      %c0_21 = arith.constant 0 : index
      %22 = vector.load %arg5[%c0_20, %c0_21] : memref<64x1xf32, #tpu.memory_space<vmem>>, vector<64x1xf32>
      tpu.vector_store %arg5[%c0_20, %c0_21], %21 {strides = array<i32>} : memref<64x1xf32, #tpu.memory_space<vmem>>, vector<64x1xf32>,
    } else {
    }
    %c0_4 = arith.constant 0 : index
    %c0_5 = arith.constant 0 : index
    %6 = vector.load %arg4[%c0_4, %c0_5] : memref<64x1xf32, #tpu.memory_space<vmem>>, vector<64x1xf32>
    %cst_6 = arith.constant dense<0.000000e+00> : vector<64xf32>
    %7 = vector.multi_reduction <add>, %2, %cst_6 [1] : vector<64x256xf32> to vector<64xf32>
    %8 = vector.shape_cast %7 : vector<64xf32> to vector<64x1xf32>
    %9 = arith.addf %6, %8 : vector<64x1xf32>
    %c0_7 = arith.constant 0 : index
    %c0_8 = arith.constant 0 : index
    %10 = vector.load %arg4[%c0_7, %c0_8] : memref<64x1xf32, #tpu.memory_space<vmem>>, vector<64x1xf32>
    tpu.vector_store %arg4[%c0_7, %c0_8], %9 {strides = array<i32>} : memref<64x1xf32, #tpu.memory_space<vmem>>, vector<64x1xf32>,
    %c0_9 = arith.constant 0 : index
    %c0_10 = arith.constant 0 : index
    %11 = vector.load %arg5[%c0_9, %c0_10] : memref<64x1xf32, #tpu.memory_space<vmem>>, vector<64x1xf32>
    %12 = arith.mulf %2, %2 : vector<64x256xf32>
    %cst_11 = arith.constant dense<0.000000e+00> : vector<64xf32>
    %13 = vector.multi_reduction <add>, %12, %cst_11 [1] : vector<64x256xf32> to vector<64xf32>
    %14 = vector.shape_cast %13 : vector<64xf32> to vector<64x1xf32>
    %15 = arith.addf %11, %14 : vector<64x1xf32>
    %c0_12 = arith.constant 0 : index
    %c0_13 = arith.constant 0 : index
    %16 = vector.load %arg5[%c0_12, %c0_13] : memref<64x1xf32, #tpu.memory_space<vmem>>, vector<64x1xf32>
    tpu.vector_store %arg5[%c0_12, %c0_13], %15 {strides = array<i32>} : memref<64x1xf32, #tpu.memory_space<vmem>>, vector<64x1xf32>,
    %17 = arith.truncf %2 : vector<64x256xf32> to vector<64x256xbf16>
    %c0_14 = arith.constant 0 : index
    %c0_15 = arith.constant 0 : index
    %18 = vector.load %arg3[%c0_14, %c0_15] : memref<64x256xbf16, #tpu.memory_space<vmem>>, vector<64x256xbf16>
    tpu.vector_store %arg3[%c0_14, %c0_15], %17 {strides = array<i32>} : memref<64x256xbf16, #tpu.memory_space<vmem>>, vector<64x256xbf16>,
    return
  }
  func.func @transform_0(%arg0: i32) -> (i32, i32) {
    %c0_i32 = arith.constant 0 : i32
    %c0_i32_0 = arith.constant 0 : i32
    %c0_i32_1 = arith.constant 0 : i32
    return %c0_i32, %c0_i32_0 : i32, i32
  }
  func.func @transform_1(%arg0: i32) -> (i32, i32) {
    %c0_i32 = arith.constant 0 : i32
    %c0_i32_0 = arith.constant 0 : i32
    return %c0_i32, %arg0 : i32, i32
  }
  func.func @transform_2(%arg0: i32) -> (i32, i32) {
    %c0_i32 = arith.constant 0 : i32
    %c0_i32_0 = arith.constant 0 : i32
    return %c0_i32, %arg0 : i32, i32
  }
  func.func @transform_3(%arg0: i32) -> (i32, i32) {
    %c0_i32 = arith.constant 0 : i32
    %c0_i32_0 = arith.constant 0 : i32
    %c0_i32_1 = arith.constant 0 : i32
    return %c0_i32, %c0_i32_0 : i32, i32
  }
  func.func @transform_4(%arg0: i32) -> (i32, i32) {
    %c0_i32 = arith.constant 0 : i32
    %c0_i32_0 = arith.constant 0 : i32
    %c0_i32_1 = arith.constant 0 : i32
    return %c0_i32, %c0_i32_0 : i32, i32
  }
}

</mosaic_0001>

<llo_original>
// kernel: tpu_custom_call.1
$region0: #{tpu_custom_call.1}
  #allocation0 [shape = 'u32[]', space=smem, size = 0x4, offset = 0x4, fixed_abs, tag = 'smem constant byte address 0x4 - core index']
  #allocation1 [shape = 'u32[72,128]{1,0:T(1,128)}', space=vmem, size = 0x9000, scoped, tag = 'internal scratch']
  %s0 = inlined_call_operand.vmem [shape: bf16[64,8], index: 0, kind: input, shape index: {}]
  %s1 = inlined_call_operand.vmem [shape: bf16[8,256], index: 1, kind: input, shape index: {}]
  %s2 = inlined_call_operand.hbm [shape: bf16[64,256], index: 2, kind: output, shape index: {0}]
  %s3 = inlined_call_operand.vmem [shape: f32[64,1], index: 3, kind: output, shape index: {1}]
  %s4 = inlined_call_operand.vmem [shape: f32[64,1], index: 4, kind: output, shape index: {2}]
  %5 = xla_tuple %s2, %s3, %s4
  %s6 = sld [smem:[#allocation0]]
  $region38: #{tpu_custom_call.1} parent=0
    _
  %s8 = ssub.s32 1, %s6
  %s9 = scalar_select 0, %s8, %s6
  $region1: #{tpu_custom_call.1} parent=0
    #allocation2 [shape = 'u8[32768]{0}', space=vmem, size = 0x8000, scoped, tag = 'output window, operand 0, single buffered']
    #allocation3 [shape = 's32[1]{0}', space=sflag, size = 0x4, scoped, tag = 'scoped memory for tpu_custom_call.1']
    %10 = vsyncpa [#allocation3], 0
    // Predicated region
    $region2: #{tpu_custom_call.1} parent=1 // pred_check
      _
    $region3: #{tpu_custom_call.1} parent=1 // pred_check_branch
      %12 = sbr.rel (0) target = $region5
    $region4: #{tpu_custom_call.1} parent=1 // pred_region
      _
    $region5: #{tpu_custom_call.1} parent=1 // pred_fallthru
      _
    // Predicated region
    $region6: #{tpu_custom_call.1} parent=1 // pred_check
      _
    $region7: #{tpu_custom_call.1} parent=1 // pred_check_branch
      %14 = sbr.rel (0) target = $region9
    $region8: #{tpu_custom_call.1} parent=1 // pred_region
      _
    $region9: #{tpu_custom_call.1} parent=1 // pred_fallthru
      _
    %v16 = vld [vmem:[%s1] sm:$0xff]
    %v17 = vld [vmem:[%s0] sm:$0xf]
    %v18 = vld [vmem:[%s0 + $0x4] sm:$0xf]
    %v19 = vld [vmem:[%s0 + $0x8] sm:$0xf]
    %v20 = vld [vmem:[%s0 + $0xc] sm:$0xf]
    %v21 = vld [vmem:[%s0 + $0x10] sm:$0xf]
    %v22 = vld [vmem:[%s0 + $0x14] sm:$0xf]
    %v23 = vld [vmem:[%s0 + $0x18] sm:$0xf]
    %v24 = vld [vmem:[%s0 + $0x1c] sm:$0xf]
    %v33 = vunpack.c.l.b16 %v17
    %v34 = vunpack.c.l.b16 %v18
    %v35 = vunpack.c.l.b16 %v19
    %v36 = vunpack.c.l.b16 %v20
    %v37 = vunpack.c.l.b16 %v21
    %v38 = vunpack.c.l.b16 %v22
    %v39 = vunpack.c.l.b16 %v23
    %v40 = vunpack.c.l.b16 %v24
    %v41 = vpack.c.b16 %v34, %v33
    %v42 = vpack.c.b16 %v36, %v35
    %v43 = vpack.c.b16 %v38, %v37
    %v44 = vpack.c.b16 %v40, %v39
    %v46 = vunpack.c.l.b16 %v16
    %v47 = vunpack.c.h.b16 %v16
    %v48 = vpack.c.b16 %v46, %v46
    %v49 = vpack.c.b16 %v47, %v47
    %vm50 = vcmask 64512
    %v52 = vsel %vm50, %v41, 0
    %v55 = vsel %vm50, %v42, 0
    %v58 = vsel %vm50, %v43, 0
    %v61 = vsel %vm50, %v44, 0
    %vm63 = vcmask 1043456
    %v65 = vsel %vm63, %v48, 0
    %v68 = vsel %vm63, %v49, 0
    %70 = vmatpush.bf16.msra.mxu0 0
    %71 = vmatpush.bf16.msra.mxu0 0
    %72 = vmatpush.bf16.msra.mxu0 0
    %73 = vmatpush.bf16.msra.mxu0 0
    %74 = vmatpush.bf16.msra.mxu0 0
    %75 = vmatpush.bf16.msra.mxu0 0
    %76 = vmatpush.bf16.msra.mxu0 0
    %77 = vmatpush.bf16.msra.mxu0 %v65
    %78 = vmatmul.bf16.gmra.mxu0 %v52
    %v79 = vpop.f32.mrf.mxu0
    %v80 = vadd.f32 0.0, %v79
    %v81 = vpop.f32.mrf.mxu0
    %v82 = vadd.f32 0.0, %v81
    %83 = vmatmul.bf16.gmra.mxu0 %v55
    %v84 = vpop.f32.mrf.mxu0
    %v85 = vadd.f32 0.0, %v84
    %v86 = vpop.f32.mrf.mxu0
    %v87 = vadd.f32 0.0, %v86
    %88 = vmatmul.bf16.gmra.mxu0 %v58
    %v89 = vpop.f32.mrf.mxu0
    %v90 = vadd.f32 0.0, %v89
    %v91 = vpop.f32.mrf.mxu0
    %v92 = vadd.f32 0.0, %v91
    %93 = vmatmul.bf16.gmra.mxu0 %v61
    %v94 = vpop.f32.mrf.mxu0
    %v95 = vadd.f32 0.0, %v94
    %v96 = vpop.f32.mrf.mxu0
    %v97 = vadd.f32 0.0, %v96
    %98 = vdwg.mxu0
    %99 = vmatpush.bf16.msra.mxu0 0
    %100 = vmatpush.bf16.msra.mxu0 0
    %101 = vmatpush.bf16.msra.mxu0 0
    %102 = vmatpush.bf16.msra.mxu0 0
    %103 = vmatpush.bf16.msra.mxu0 0
    %104 = vmatpush.bf16.msra.mxu0 0
    %105 = vmatpush.bf16.msra.mxu0 0
    %106 = vmatpush.bf16.msra.mxu0 %v68
    %107 = vmatmul.bf16.gmra.mxu0 %v52
    %v108 = vpop.f32.mrf.mxu0
    %v109 = vadd.f32 0.0, %v108
    %v110 = vpop.f32.mrf.mxu0
    %v111 = vadd.f32 0.0, %v110
    %112 = vmatmul.bf16.gmra.mxu0 %v55
    %v113 = vpop.f32.mrf.mxu0
    %v114 = vadd.f32 0.0, %v113
    %v115 = vpop.f32.mrf.mxu0
    %v116 = vadd.f32 0.0, %v115
    %117 = vmatmul.bf16.gmra.mxu0 %v58
    %v118 = vpop.f32.mrf.mxu0
    %v119 = vadd.f32 0.0, %v118
    %v120 = vpop.f32.mrf.mxu0
    %v121 = vadd.f32 0.0, %v120
    %122 = vmatmul.bf16.gmra.mxu0 %v61
    %v123 = vpop.f32.mrf.mxu0
    %v124 = vadd.f32 0.0, %v123
    %v125 = vpop.f32.mrf.mxu0
    %v126 = vadd.f32 0.0, %v125
    %127 = vdwg.mxu0
    %p128 = scmp.eq.s32.totalorder 0, 0
    // Predicated region
    $region10: #{tpu_custom_call.1} parent=1 // pred_check
      %p129 = pneg %p128
    $region11: #{tpu_custom_call.1} parent=1 // pred_check_branch
      %131 = sbr.rel (%p129) target = $region13
    $region12: #{tpu_custom_call.1} parent=1 // pred_region
      %vm132 = vcmask 7168
      %133 = vst.msk [vmem:[%s3] sm:$0xff] %vm132, 0.0
      %134 = vst.msk [vmem:[%s3 + $0x8] sm:$0xff] %vm132, 0.0
      %135 = vst.msk [vmem:[%s3 + $0x10] sm:$0xff] %vm132, 0.0
      %136 = vst.msk [vmem:[%s3 + $0x18] sm:$0xff] %vm132, 0.0
      %137 = vst.msk [vmem:[%s3 + $0x20] sm:$0xff] %vm132, 0.0
      %138 = vst.msk [vmem:[%s3 + $0x28] sm:$0xff] %vm132, 0.0
      %139 = vst.msk [vmem:[%s3 + $0x30] sm:$0xff] %vm132, 0.0
      %140 = vst.msk [vmem:[%s3 + $0x38] sm:$0xff] %vm132, 0.0
      %141 = vst.msk [vmem:[%s4] sm:$0xff] %vm132, 0.0
      %142 = vst.msk [vmem:[%s4 + $0x8] sm:$0xff] %vm132, 0.0
      %143 = vst.msk [vmem:[%s4 + $0x10] sm:$0xff] %vm132, 0.0
      %144 = vst.msk [vmem:[%s4 + $0x18] sm:$0xff] %vm132, 0.0
      %145 = vst.msk [vmem:[%s4 + $0x20] sm:$0xff] %vm132, 0.0
      %146 = vst.msk [vmem:[%s4 + $0x28] sm:$0xff] %vm132, 0.0
      %147 = vst.msk [vmem:[%s4 + $0x30] sm:$0xff] %vm132, 0.0
      %148 = vst.msk [vmem:[%s4 + $0x38] sm:$0xff] %vm132, 0.0
    $region13: #{tpu_custom_call.1} parent=1 // pred_fallthru
      _
    %v149 = vld [vmem:[%s3] sm:$0xff]
    %v150 = vld [vmem:[%s3 + $0x8] sm:$0xff]
    %v151 = vld [vmem:[%s3 + $0x10] sm:$0xff]
    %v152 = vld [vmem:[%s3 + $0x18] sm:$0xff]
    %v153 = vld [vmem:[%s3 + $0x20] sm:$0xff]
    %v154 = vld [vmem:[%s3 + $0x28] sm:$0xff]
    %v155 = vld [vmem:[%s3 + $0x30] sm:$0xff]
    %v156 = vld [vmem:[%s3 + $0x38] sm:$0xff]
    %v157 = vadd.f32 %v80, %v109
    %158 = vadd.xlane.f32.xlu0 %v157
    %v159 = vpop.xlane.xlu0 %158
    %v160 = vadd.f32 %v82, %v111
    %161 = vadd.xlane.f32.xlu0 %v160
    %v162 = vpop.xlane.xlu0 %161
    %v163 = vadd.f32 %v85, %v114
    %164 = vadd.xlane.f32.xlu0 %v163
    %v165 = vpop.xlane.xlu0 %164
    %v166 = vadd.f32 %v87, %v116
    %167 = vadd.xlane.f32.xlu0 %v166
    %v168 = vpop.xlane.xlu0 %167
    %v169 = vadd.f32 %v90, %v119
    %170 = vadd.xlane.f32.xlu0 %v169
    %v171 = vpop.xlane.xlu0 %170
    %v172 = vadd.f32 %v92, %v121
    %173 = vadd.xlane.f32.xlu0 %v172
    %v174 = vpop.xlane.xlu0 %173
    %v175 = vadd.f32 %v95, %v124
    %176 = vadd.xlane.f32.xlu0 %v175
    %v177 = vpop.xlane.xlu0 %176
    %v178 = vadd.f32 %v97, %v126
    %179 = vadd.xlane.f32.xlu0 %v178
    %v180 = vpop.xlane.xlu0 %179
    %v181 = vadd.f32 %v149, %v159
    %v182 = vadd.f32 %v150, %v162
    %v183 = vadd.f32 %v151, %v165
    %v184 = vadd.f32 %v152, %v168
    %v185 = vadd.f32 %v153, %v171
    %v186 = vadd.f32 %v154, %v174
    %v187 = vadd.f32 %v155, %v177
    %v188 = vadd.f32 %v156, %v180
    %vm189 = vcmask 7168
    %190 = vst.msk [vmem:[%s3] sm:$0xff] %vm189, %v181
    %191 = vst.msk [vmem:[%s3 + $0x8] sm:$0xff] %vm189, %v182
    %192 = vst.msk [vmem:[%s3 + $0x10] sm:$0xff] %vm189, %v183
    %193 = vst.msk [vmem:[%s3 + $0x18] sm:$0xff] %vm189, %v184
    %194 = vst.msk [vmem:[%s3 + $0x20] sm:$0xff] %vm189, %v185
    %195 = vst.msk [vmem:[%s3 + $0x28] sm:$0xff] %vm189, %v186
    %196 = vst.msk [vmem:[%s3 + $0x30] sm:$0xff] %vm189, %v187
    %197 = vst.msk [vmem:[%s3 + $0x38] sm:$0xff] %vm189, %v188
    %v198 = vld [vmem:[%s4] sm:$0xff]
    %v199 = vld [vmem:[%s4 + $0x8] sm:$0xff]
    %v200 = vld [vmem:[%s4 + $0x10] sm:$0xff]
    %v201 = vld [vmem:[%s4 + $0x18] sm:$0xff]
    %v202 = vld [vmem:[%s4 + $0x20] sm:$0xff]
    %v203 = vld [vmem:[%s4 + $0x28] sm:$0xff]
    %v204 = vld [vmem:[%s4 + $0x30] sm:$0xff]
    %v205 = vld [vmem:[%s4 + $0x38] sm:$0xff]
    %v206 = vmul.f32 %v80, %v80
    %v207 = vmul.f32 %v109, %v109
    %v208 = vmul.f32 %v82, %v82
    %v209 = vmul.f32 %v111, %v111
    %v210 = vmul.f32 %v85, %v85
    %v211 = vmul.f32 %v114, %v114
    %v212 = vmul.f32 %v87, %v87
    %v213 = vmul.f32 %v116, %v116
    %v214 = vmul.f32 %v90, %v90
    %v215 = vmul.f32 %v119, %v119
    %v216 = vmul.f32 %v92, %v92
    %v217 = vmul.f32 %v121, %v121
    %v218 = vmul.f32 %v95, %v95
    %v219 = vmul.f32 %v124, %v124
    %v220 = vmul.f32 %v97, %v97
    %v221 = vmul.f32 %v126, %v126
    %v222 = vadd.f32 %v206, %v207
    %223 = vadd.xlane.f32.xlu0 %v222
    %v224 = vpop.xlane.xlu0 %223
    %v225 = vadd.f32 %v208, %v209
    %226 = vadd.xlane.f32.xlu0 %v225
    %v227 = vpop.xlane.xlu0 %226
    %v228 = vadd.f32 %v210, %v211
    %229 = vadd.xlane.f32.xlu0 %v228
    %v230 = vpop.xlane.xlu0 %229
    %v231 = vadd.f32 %v212, %v213
    %232 = vadd.xlane.f32.xlu0 %v231
    %v233 = vpop.xlane.xlu0 %232
    %v234 = vadd.f32 %v214, %v215
    %235 = vadd.xlane.f32.xlu0 %v234
    %v236 = vpop.xlane.xlu0 %235
    %v237 = vadd.f32 %v216, %v217
    %238 = vadd.xlane.f32.xlu0 %v237
    %v239 = vpop.xlane.xlu0 %238
    %v240 = vadd.f32 %v218, %v219
    %241 = vadd.xlane.f32.xlu0 %v240
    %v242 = vpop.xlane.xlu0 %241
    %v243 = vadd.f32 %v220, %v221
    %244 = vadd.xlane.f32.xlu0 %v243
    %v245 = vpop.xlane.xlu0 %244
    %v246 = vadd.f32 %v198, %v224
    %v247 = vadd.f32 %v199, %v227
    %v248 = vadd.f32 %v200, %v230
    %v249 = vadd.f32 %v201, %v233
    %v250 = vadd.f32 %v202, %v236
    %v251 = vadd.f32 %v203, %v239
    %v252 = vadd.f32 %v204, %v242
    %v253 = vadd.f32 %v205, %v245
    %254 = vst.msk [vmem:[%s4] sm:$0xff] %vm189, %v246
    %255 = vst.msk [vmem:[%s4 + $0x8] sm:$0xff] %vm189, %v247
    %256 = vst.msk [vmem:[%s4 + $0x10] sm:$0xff] %vm189, %v248
    %257 = vst.msk [vmem:[%s4 + $0x18] sm:$0xff] %vm189, %v249
    %258 = vst.msk [vmem:[%s4 + $0x20] sm:$0xff] %vm189, %v250
    %259 = vst.msk [vmem:[%s4 + $0x28] sm:$0xff] %vm189, %v251
    %260 = vst.msk [vmem:[%s4 + $0x30] sm:$0xff] %vm189, %v252
    %261 = vst.msk [vmem:[%s4 + $0x38] sm:$0xff] %vm189, %v253
    %v262 = vpack.c.bf16 %v109, %v80
    %v263 = vpack.c.bf16 %v111, %v82
    %v264 = vpack.c.bf16 %v114, %v85
    %v265 = vpack.c.bf16 %v116, %v87
    %v266 = vpack.c.bf16 %v119, %v90
    %v267 = vpack.c.bf16 %v121, %v92
    %v268 = vpack.c.bf16 %v124, %v95
    %v269 = vpack.c.bf16 %v126, %v97
    %270 = vst [vmem:[#allocation2] sm:$0xff] %v262
    %271 = vst [vmem:[#allocation2 + $0x8] sm:$0xff] %v263
    %272 = vst [vmem:[#allocation2 + $0x10] sm:$0xff] %v264
    %273 = vst [vmem:[#allocation2 + $0x18] sm:$0xff] %v265
    %274 = vst [vmem:[#allocation2 + $0x20] sm:$0xff] %v266
    %275 = vst [vmem:[#allocation2 + $0x28] sm:$0xff] %v267
    %276 = vst [vmem:[#allocation2 + $0x30] sm:$0xff] %v268
    %277 = vst [vmem:[#allocation2 + $0x38] sm:$0xff] %v269
    // Predicated region
    $region14: #{tpu_custom_call.1} parent=1 // pred_check
      _
    $region15: #{tpu_custom_call.1} parent=1 // pred_check_branch
      %279 = sbr.rel (0) target = $region17
    $region16: #{tpu_custom_call.1} parent=1 // pred_region
      %281 = vsyncadd [#allocation3], 0
      %s282 = sshll.u32 [#allocation2], 4
      %s283 = int_to_ptr.vmem [resolvable:$true] %s282
      %s284 = sshll.u32 %s2, 4
      %s285 = int_to_ptr.hbm [resolvable:$true] %s284
      %290 = dma.vmem_to_hbm [thread:$0]  %s283, 1024, %s285, [#allocation3], 128, 128, 8
    $region17: #{tpu_custom_call.1} parent=1 // pred_fallthru
      _
    // Predicated region
    $region18: #{tpu_custom_call.1} parent=1 // pred_check
      _
    $region19: #{tpu_custom_call.1} parent=1 // pred_check_branch
      %292 = sbr.rel (0) target = $region21
    $region20: #{tpu_custom_call.1} parent=1 // pred_region
      _
    $region21: #{tpu_custom_call.1} parent=1 // pred_fallthru
      _
    // Predicated region
    $region22: #{tpu_custom_call.1} parent=1 // pred_check
      _
    $region23: #{tpu_custom_call.1} parent=1 // pred_check_branch
      %294 = sbr.rel (0) target = $region25
    $region24: #{tpu_custom_call.1} parent=1 // pred_region
      _
    $region25: #{tpu_custom_call.1} parent=1 // pred_fallthru
      _
    // Predicated region
    $region26: #{tpu_custom_call.1} parent=1 // pred_check
      _
    $region27: #{tpu_custom_call.1} parent=1 // pred_check_branch
      %296 = sbr.rel (0) target = $region29
    $region28: #{tpu_custom_call.1} parent=1 // pred_region
      %298 = dma.done [#allocation3], 1024
    $region29: #{tpu_custom_call.1} parent=1 // pred_fallthru
      _
    // Predicated region
    $region30: #{tpu_custom_call.1} parent=1 // pred_check
      _
    $region31: #{tpu_custom_call.1} parent=1 // pred_check_branch
      %300 = sbr.rel (0) target = $region33
    $region32: #{tpu_custom_call.1} parent=1 // pred_region
      _
    $region33: #{tpu_custom_call.1} parent=1 // pred_fallthru
      _
    // Predicated region
    $region34: #{tpu_custom_call.1} parent=1 // pred_check
      _
    $region35: #{tpu_custom_call.1} parent=1 // pred_check_branch
      %302 = sbr.rel (0) target = $region37
    $region36: #{tpu_custom_call.1} parent=1 // pred_region
      _
    $region37: #{tpu_custom_call.1} parent=1 // pred_fallthru
      _
    %303 = vsyncpa [#allocation3], 1

</llo_original>
